<compile_context>
chip_gen: v7x
topology: tpu7x:2x2x1
jax: 0.10.0
libtpu: 0.0.40
codegen_flags: <defaults>
</compile_context>

<pallas_src>
import math
import jax
import jax.numpy as jnp
from jax.experimental import pallas as pl
from jax.experimental.pallas import tpu as pltpu


def _style_block_kernel(neg_slope=0.2):
    def kernel(wts_ref, patches_ref, noise_ref, bias_ref, snoise_ref, out_ref):
        # wts_ref     : [1, Cout, Cin*9]   VMEM  per-batch demodulated conv weights
        # patches_ref : [1, Cin*9, H*W]    VMEM  im2col'd input (lane-dense)
        # noise_ref   : [1, 1, H*W]        VMEM
        # bias_ref    : [Cout, 1]          VMEM
        # snoise_ref  : [1]                SMEM  noise scale
        # out_ref     : [1, Cout, H*W]     VMEM  (lane-dense; reshaped in wrapper)
        y = jnp.dot(wts_ref[0], patches_ref[0],
                    preferred_element_type=jnp.float32,
                    precision=jax.lax.Precision.HIGHEST)        # [Cout, H*W] on MXU
        y = y + snoise_ref[0] * noise_ref[0]                    # sublane-bcast noise row
        y = y + bias_ref[...]                                   # lane-bcast per-channel bias
        out_ref[0] = jnp.maximum(y, neg_slope * y)              # LeakyReLU(0.2)
    return kernel


def style_block_forward(x, w_latent, noise, lin_w, lin_b, conv_w, scale_noise, bias,
                        eps=1e-8):
    """
    x          : [B, Cin, H, W]      float32
    w_latent   : [B, D]              float32
    noise      : [B, 1, H, W]        float32 (or None)
    lin_w      : [Cin, D]            float32  (EqualizedWeight raw randn)
    lin_b      : [Cin]               float32  (init ones * 1.0)
    conv_w     : [Cout, Cin, 3, 3]   float32  (EqualizedWeight raw randn)
    scale_noise: [1]                 float32
    bias       : [Cout]              float32
    returns    : [B, Cout, H, W]     float32
    """
    B, Cin, H, W = x.shape
    Cout = conv_w.shape[0]
    D = lin_w.shape[1]
    K = 3
    HW = H * W
    KK = Cin * K * K

    # ---- tiny hoisted preamble: style -> modulate -> demodulate (O(B*Cout*Cin*9)) ----
    style = w_latent @ (lin_w.T * (1.0 / math.sqrt(D))) + lin_b[None, :]        # [B, Cin]
    wmod = conv_w[None] * (1.0 / math.sqrt(KK)) * style[:, None, :, None, None]  # [B,Cout,Cin,3,3]
    sigma_inv = jax.lax.rsqrt(jnp.sum(wmod * wmod, axis=(2, 3, 4), keepdims=True) + eps)
    wts = (wmod * sigma_inv).reshape(B, Cout, KK).astype(jnp.float32)           # [B,Cout,Cin*9]

    # ---- lane-dense layout prep (wrapper-side layout plumbing only) ----
    # TODO(synk): at real StyleGAN resolutions do NOT im2col/pad in the wrapper (9x HBM
    # expansion + extra pad copy): keep x as [Cin, H*W] slabs, generate the kw shifts
    # in-kernel with pltpu.roll, tile over H with halo rows, and re-derive the H-tile
    # per generation (v7x 64 MiB VMEM vs 128 MiB on v5e/v6e).
    if noise is None:
        noise = jnp.zeros((B, 1, H, W), x.dtype)
    x_pad = jnp.pad(x, ((0, 0), (0, 0), (1, 1), (1, 1)))                        # [B,Cin,H+2,W+2]
    patches = jnp.stack([x_pad[:, :, kh:kh + H, kw:kw + W]
                         for kh in range(K) for kw in range(K)], axis=2)        # [B,Cin,9,H,W]
    patches = patches.reshape(B, KK, HW).astype(jnp.float32)                    # [B,Cin*9,H*W]
    noise_flat = noise.reshape(B, 1, HW).astype(jnp.float32)
    bias_col = bias.reshape(Cout, 1).astype(jnp.float32)
    scale_noise = scale_noise.reshape(1).astype(jnp.float32)

    flops = 2 * B * Cout * KK * HW + 5 * B * Cout * HW
    bytes_accessed = 4 * (B * KK * HW + B * HW + B * Cout * HW
                          + B * Cout * KK + Cout + 1)

    out_flat = pl.pallas_call(
        _style_block_kernel(),
        out_shape=jax.ShapeDtypeStruct((B, Cout, HW), jnp.float32),
        grid=(B,),  # one batch element per step; "parallel" shards across v7x's 2 TCs
        in_specs=[
            pl.BlockSpec((1, Cout, KK), lambda b: (b, 0, 0)),        # per-batch weights
            pl.BlockSpec((1, KK, HW), lambda b: (b, 0, 0)),          # im2col patches
            pl.BlockSpec((1, 1, HW), lambda b: (b, 0, 0)),           # noise row
            pl.BlockSpec((Cout, 1), lambda b: (0, 0)),               # per-channel bias
            pl.BlockSpec(memory_space=pltpu.MemorySpace.SMEM),       # noise scale scalar
        ],
        out_specs=pl.BlockSpec((1, Cout, HW), lambda b: (b, 0, 0)),
        compiler_params=pltpu.CompilerParams(
            dimension_semantics=("parallel",),
            vmem_limit_bytes=32 * 1024 * 1024),
        cost_estimate=pl.CostEstimate(flops=flops, transcendentals=0,
                                      bytes_accessed=bytes_accessed),
    )(wts, patches, noise_flat, bias_col, scale_noise)

    # Bit-identical row-major reshape back to NCHW.
    return out_flat.reshape(B, Cout, H, W)


def style_block_reference(x, w_latent, noise, lin_w, lin_b, conv_w, scale_noise, bias,
                          eps=1e-8):
    B, Cin, H, W = x.shape
    Cout = conv_w.shape[0]
    D = lin_w.shape[1]
    K = 3
    s = w_latent @ (lin_w * (1.0 / math.sqrt(D))).T + lin_b[None, :]            # [B, Cin]
    wts = conv_w[None] * (1.0 / math.sqrt(Cin * K * K)) * s[:, None, :, None, None]
    wts = wts * jax.lax.rsqrt(jnp.sum(wts ** 2, axis=(2, 3, 4), keepdims=True) + eps)
    x_pad = jnp.pad(x, ((0, 0), (0, 0), (1, 1), (1, 1)))
    patches = jnp.stack([x_pad[:, :, kh:kh + H, kw:kw + W]
                         for kh in range(K) for kw in range(K)], axis=2)        # [B,Cin,9,H,W]
    y = jnp.einsum('boct,bcthw->bohw', wts.reshape(B, Cout, Cin, K * K), patches,
                   precision=jax.lax.Precision.HIGHEST)
    if noise is not None:
        y = y + scale_noise[None, :, None, None] * noise
    y = y + bias[None, :, None, None]
    return jnp.where(y >= 0, y, 0.2 * y)


if __name__ == "__main__":
    # StyleBlock(d_latent=32, in_features=4, out_features=4), batch=2, spatial 16x16
    B, Cin, Cout, H, W, D = 2, 4, 4, 16, 16, 32

    key = jax.random.PRNGKey(0)
    kx, kw, kn, klw, kcw, kb = jax.random.split(key, 6)

    x = jax.random.normal(kx, (B, Cin, H, W), dtype=jnp.float32)
    w_latent = jax.random.normal(kw, (B, D), dtype=jnp.float32)
    noise = jax.random.normal(kn, (B, 1, H, W), dtype=jnp.float32)

    # Parameters mirroring the PyTorch module's __init__ shapes. scale_noise/bias are
    # zero-initialized in torch; small non-zero values are used here so the noise and
    # bias paths are actually exercised by the correctness check.
    lin_w = jax.random.normal(klw, (Cin, D), dtype=jnp.float32)         # EqualizedWeight([Cin, D])
    lin_b = jnp.ones((Cin,), dtype=jnp.float32)                         # bias = 1.0
    conv_w = jax.random.normal(kcw, (Cout, Cin, 3, 3), dtype=jnp.float32)
    scale_noise = jnp.array([0.1], dtype=jnp.float32)
    bias = 0.1 * jax.random.normal(kb, (Cout,), dtype=jnp.float32)

    out = style_block_forward(x, w_latent, noise, lin_w, lin_b, conv_w, scale_noise, bias)
    out = jax.block_until_ready(out)

    ref = style_block_reference(x, w_latent, noise, lin_w, lin_b, conv_w, scale_noise, bias)
    assert out.shape == (B, Cout, H, W)
    assert jnp.allclose(out, ref, atol=1e-4, rtol=1e-4), float(jnp.max(jnp.abs(out - ref)))

    print("KERNEL_OK")
</pallas_src>

<mosaic_0001>
module attributes {stable_mosaic.version = 11 : i64} {
  func.func @kernel(%arg0: i32, %arg1: memref<1x4x36xf32, #tpu.memory_space<vmem>>, %arg2: memref<1x36x256xf32, #tpu.memory_space<vmem>>, %arg3: memref<1x1x256xf32, #tpu.memory_space<vmem>>, %arg4: memref<4x1xf32, #tpu.memory_space<vmem>>, %arg5: memref<1xf32, #tpu.memory_space<smem>>, %arg6: memref<1x4x256xf32, #tpu.memory_space<vmem>>) attributes {dimension_semantics = [#tpu.dimension_semantics<parallel>], iteration_bounds = array<i64: 2>, scalar_prefetch = 0 : i64, scratch_operands = 0 : i64, tpu.core_type = #tpu.core_type<tc>, window_params = [{transform_indices = @transform_0, window_bounds = array<i64: 1, 4, 36>}, {transform_indices = @transform_1, window_bounds = array<i64: 1, 36, 256>}, {transform_indices = @transform_2, window_bounds = array<i64: 1, 1, 256>}, {pipeline_mode = #tpu.pipeline_mode<synchronous>, transform_indices = @transform_3, window_bounds = array<i64: 4, 1>}, {transform_indices = @transform_4, window_bounds = array<i64: 1>}, {transform_indices = @transform_5, window_bounds = array<i64: 1, 4, 256>}]} {
    %c0 = arith.constant 0 : index
    %c0_0 = arith.constant 0 : index
    %c0_1 = arith.constant 0 : index
    %0 = vector.load %arg1[%c0, %c0_0, %c0_1] : memref<1x4x36xf32, #tpu.memory_space<vmem>>, vector<1x4x36xf32>
    %1 = vector.shape_cast %0 : vector<1x4x36xf32> to vector<4x36xf32>
    %c0_2 = arith.constant 0 : index
    %c0_3 = arith.constant 0 : index
    %c0_4 = arith.constant 0 : index
    %2 = vector.load %arg2[%c0_2, %c0_3, %c0_4] : memref<1x36x256xf32, #tpu.memory_space<vmem>>, vector<1x36x256xf32>
    %3 = vector.shape_cast %2 : vector<1x36x256xf32> to vector<36x256xf32>
    %cst = arith.constant dense<0.000000e+00> : vector<4x256xf32>
    %4 = tpu.matmul %1, %3, %cst {dimension_numbers = #tpu.dot_dimension_numbers<[1], [0], [0], [1], [0, 0, 1, 1], [], []>, precision = #tpu.contract_precision<fp32>} : vector<4x36xf32>, vector<36x256xf32>, vector<4x256xf32> -> vector<4x256xf32>
    %c0_5 = arith.constant 0 : index
    %5 = memref.load %arg5[%c0_5] : memref<1xf32, #tpu.memory_space<smem>>
    %c0_6 = arith.constant 0 : index
    %c0_7 = arith.constant 0 : index
    %c0_8 = arith.constant 0 : index
    %6 = vector.load %arg3[%c0_6, %c0_7, %c0_8] : memref<1x1x256xf32, #tpu.memory_space<vmem>>, vector<1x1x256xf32>
    %7 = vector.shape_cast %6 : vector<1x1x256xf32> to vector<1x256xf32>
    %8 = vector.broadcast %5 : f32 to vector<1x256xf32>
    %9 = arith.mulf %8, %7 : vector<1x256xf32>
    %10 = vector.broadcast %9 : vector<1x256xf32> to vector<4x256xf32>
    %11 = arith.addf %4, %10 : vector<4x256xf32>
    %c0_9 = arith.constant 0 : index
    %c0_10 = arith.constant 0 : index
    %12 = vector.load %arg4[%c0_9, %c0_10] : memref<4x1xf32, #tpu.memory_space<vmem>>, vector<4x1xf32>
    %13 = vector.broadcast %12 : vector<4x1xf32> to vector<4x256xf32>
    %14 = arith.addf %11, %13 : vector<4x256xf32>
    %cst_11 = arith.constant 2.000000e-01 : f32
    %15 = vector.broadcast %cst_11 : f32 to vector<4x256xf32>
    %16 = arith.mulf %15, %14 : vector<4x256xf32>
    %17 = arith.maximumf %14, %16 : vector<4x256xf32>
    %c0_12 = arith.constant 0 : index
    %c0_13 = arith.constant 0 : index
    %c0_14 = arith.constant 0 : index
    %18 = vector.load %arg6[%c0_12, %c0_13, %c0_14] : memref<1x4x256xf32, #tpu.memory_space<vmem>>, vector<1x4x256xf32>
    %19 = vector.shape_cast %18 : vector<1x4x256xf32> to vector<4x256xf32>
    %20 = vector.shape_cast %17 : vector<4x256xf32> to vector<1x4x256xf32>
    tpu.vector_store %arg6[%c0_12, %c0_13, %c0_14], %20 {strides = array<i32>} : memref<1x4x256xf32, #tpu.memory_space<vmem>>, vector<1x4x256xf32>,
    return
  }
  func.func @transform_0(%arg0: i32) -> (i32, i32, i32) {
    %c0_i32 = arith.constant 0 : i32
    %c0_i32_0 = arith.constant 0 : i32
    %c0_i32_1 = arith.constant 0 : i32
    return %arg0, %c0_i32, %c0_i32_0 : i32, i32, i32
  }
  func.func @transform_1(%arg0: i32) -> (i32, i32, i32) {
    %c0_i32 = arith.constant 0 : i32
    %c0_i32_0 = arith.constant 0 : i32
    %c0_i32_1 = arith.constant 0 : i32
    return %arg0, %c0_i32, %c0_i32_0 : i32, i32, i32
  }
  func.func @transform_2(%arg0: i32) -> (i32, i32, i32) {
    %c0_i32 = arith.constant 0 : i32
    %c0_i32_0 = arith.constant 0 : i32
    %c0_i32_1 = arith.constant 0 : i32
    return %arg0, %c0_i32, %c0_i32_0 : i32, i32, i32
  }
  func.func @transform_3(%arg0: i32) -> (i32, i32) {
    %c0_i32 = arith.constant 0 : i32
    %c0_i32_0 = arith.constant 0 : i32
    %c0_i32_1 = arith.constant 0 : i32
    return %c0_i32, %c0_i32_0 : i32, i32
  }
  func.func @transform_4(%arg0: i32) -> i32 {
    %c0_i32 = arith.constant 0 : i32
    %c0_i32_0 = arith.constant 0 : i32
    return %c0_i32 : i32
  }
  func.func @transform_5(%arg0: i32) -> (i32, i32, i32) {
    %c0_i32 = arith.constant 0 : i32
    %c0_i32_0 = arith.constant 0 : i32
    %c0_i32_1 = arith.constant 0 : i32
    return %arg0, %c0_i32, %c0_i32_0 : i32, i32, i32
  }
}

</mosaic_0001>

<llo_original>
// kernel: tpu_custom_call.1
$region0: #{tpu_custom_call.1}
  #allocation0 [shape = 'u32[]', space=smem, size = 0x4, offset = 0x4, fixed_abs, tag = 'smem constant byte address 0x4 - core index']
  #allocation1 [shape = 'u32[144,128]{1,0:T(1,128)}', space=vmem, size = 0x12000, scoped, tag = 'internal scratch']
  #allocation2 [shape = 'f32[1]{0:T(128)S(6)}', space=smem, size = 0x200, scoped, tag = 'scoped memory for tpu_custom_call.1']
  %s0 = inlined_call_operand.vmem [shape: f32[2,4,36], index: 0, kind: input, shape index: {}]
  %s1 = inlined_call_operand.vmem [shape: f32[2,36,256], index: 1, kind: input, shape index: {}]
  %s2 = inlined_call_operand.vmem [shape: f32[2,1,256], index: 2, kind: input, shape index: {}]
  %s3 = inlined_call_operand.vmem [shape: f32[4,1], index: 3, kind: input, shape index: {}]
  %s4 = inlined_call_operand.<no memory space> [shape: f32[1], index: 4, kind: input, shape index: {}]
  %s5 = inlined_call_operand.hbm [shape: f32[2,4,256], index: 5, kind: output, shape index: {}]
  %s6 = sld [smem:[#allocation0]]
  $region53: #{tpu_custom_call.1} parent=0
    _
  %s8 = ssub.s32 1, %s6
  %s9 = scalar_select 0, %s8, %s6
  %10 = sst [smem:[#allocation2]] %s4
  $region1: #{tpu_custom_call.1} parent=0
    #allocation3 [shape = 'u8[8192]{0}', space=vmem, size = 0x2000, scoped, tag = 'output window, operand 0']
    #allocation4 [shape = 's32[2]{0}', space=sflag, size = 0x8, scoped, tag = 'scoped memory for tpu_custom_call.1']
    %11 = vsyncpa [#allocation4], 0
    %s12 = scalar_lea.sflag [#allocation4], 1
    %13 = vsyncpa %s12, 0
    loop: start=0, step=1, limit=4
    $region2: #{tpu_custom_call.1} parent=1 // loop_pre_header
      _
    $region3: #{tpu_custom_call.1} parent=1 // loop_header
      %s15 = sphi 0, %s19
      %p16 = scmp.ge.s32.totalorder %s15, 4
      %s25 = sphi 0, %s27
      %s28 = sphi 0, %s25
      %s29 = sphi 0, %s28
      %s45 = sphi 0, %s29
      %s51 = sphi 0, %s53
      %s54 = sphi 0, %s51
      %s55 = sphi 0, %s54
      %s71 = sphi 0, %s55
      %s77 = sphi 0, %s79
      %s80 = sphi 0, %s77
      %s81 = sphi 0, %s80
      %s97 = sphi 0, %s81
      %s101 = sphi 0, %s101
      %s103 = sphi 0, %s101
      %s104 = sphi 0, %s103
      %s118 = sphi 0, %s104
      %s122 = sphi 0, %s122
      %s124 = sphi 0, %s122
      %s125 = sphi 0, %s124
      %s139 = sphi 0, %s125
      %s145 = sphi 0, %s147
      %s148 = sphi 0, %s145
      %s149 = sphi 0, %s148
      %s165 = sphi 0, %s149
    $region4: #{tpu_custom_call.1} parent=1 // loop_header_branch
      %18 = sbr.rel (%p16) target = $region8
    $region5: #{tpu_custom_call.1} parent=1 // loop_body
      %s20 = ssub.s32 %s15, 1
      %s21 = ssub.s32 %s15, 2
      %s22 = sadd.s32 %s15, 1
      %s23 = ssub.s32 %s15, %s22
      %p24 = scmp.eq.s32.totalorder %s23, 0
      %s26 = sadd.s32 %s25, 1
      %s27 = scalar_select %p24, %s25, %s26
      %p30 = pneg %p24
      %p31 = scmp.eq.s32.totalorder %s15, 1
      %p32 = por %p30, %p31
      %p33 = scmp.ne.s32.totalorder %s25, %s28
      %p34 = scmp.eq.s32.totalorder %s15, 0
      %p35 = por %p33, %p34
      %p36 = scmp.ne.s32.totalorder %s25, %s28
      %p37 = scmp.eq.s32.totalorder %s20, 1
      %p38 = por %p36, %p37
      %p39 = scmp.ne.s32.totalorder %s28, %s29
      %p40 = scmp.eq.s32.totalorder %s20, 0
      %p41 = por %p39, %p40
      %p42 = scmp.ne.s32.totalorder %s28, %s29
      %p43 = scmp.eq.s32.totalorder %s21, 1
      %p44 = por %p42, %p43
      %p46 = scmp.ne.s32.totalorder %s29, %s45
      %p47 = scmp.eq.s32.totalorder %s21, 0
      %p48 = por %p46, %p47
      %s49 = ssub.s32 %s15, %s22
      %p50 = scmp.eq.s32.totalorder %s49, 0
      %s52 = sadd.s32 %s51, 1
      %s53 = scalar_select %p50, %s51, %s52
      %p56 = pneg %p50
      %p57 = scmp.eq.s32.totalorder %s15, 1
      %p58 = por %p56, %p57
      %p59 = scmp.ne.s32.totalorder %s51, %s54
      %p60 = scmp.eq.s32.totalorder %s15, 0
      %p61 = por %p59, %p60
      %p62 = scmp.ne.s32.totalorder %s51, %s54
      %p63 = scmp.eq.s32.totalorder %s20, 1
      %p64 = por %p62, %p63
      %p65 = scmp.ne.s32.totalorder %s54, %s55
      %p66 = scmp.eq.s32.totalorder %s20, 0
      %p67 = por %p65, %p66
      %p68 = scmp.ne.s32.totalorder %s54, %s55
      %p69 = scmp.eq.s32.totalorder %s21, 1
      %p70 = por %p68, %p69
      %p72 = scmp.ne.s32.totalorder %s55, %s71
      %p73 = scmp.eq.s32.totalorder %s21, 0
      %p74 = por %p72, %p73
      %s75 = ssub.s32 %s15, %s22
      %p76 = scmp.eq.s32.totalorder %s75, 0
      %s78 = sadd.s32 %s77, 1
      %s79 = scalar_select %p76, %s77, %s78
      %p82 = pneg %p76
      %p83 = scmp.eq.s32.totalorder %s15, 1
      %p84 = por %p82, %p83
      %p85 = scmp.ne.s32.totalorder %s77, %s80
      %p86 = scmp.eq.s32.totalorder %s15, 0
      %p87 = por %p85, %p86
      %p88 = scmp.ne.s32.totalorder %s77, %s80
      %p89 = scmp.eq.s32.totalorder %s20, 1
      %p90 = por %p88, %p89
      %p91 = scmp.ne.s32.totalorder %s80, %s81
      %p92 = scmp.eq.s32.totalorder %s20, 0
      %p93 = por %p91, %p92
      %p94 = scmp.ne.s32.totalorder %s80, %s81
      %p95 = scmp.eq.s32.totalorder %s21, 1
      %p96 = por %p94, %p95
      %p98 = scmp.ne.s32.totalorder %s81, %s97
      %p99 = scmp.eq.s32.totalorder %s21, 0
      %p100 = por %p98, %p99
      %s102 = sadd.s32 %s101, 1
      %p105 = scmp.eq.s32.totalorder %s15, 1
      %p106 = scmp.ne.s32.totalorder %s101, %s103
      %p107 = scmp.eq.s32.totalorder %s15, 0
      %p108 = por %p106, %p107
      %p109 = scmp.ne.s32.totalorder %s101, %s103
      %p110 = scmp.eq.s32.totalorder %s20, 1
      %p111 = por %p109, %p110
      %p112 = scmp.ne.s32.totalorder %s103, %s104
      %p113 = scmp.eq.s32.totalorder %s20, 0
      %p114 = por %p112, %p113
      %p115 = scmp.ne.s32.totalorder %s103, %s104
      %p116 = scmp.eq.s32.totalorder %s21, 1
      %p117 = por %p115, %p116
      %p119 = scmp.ne.s32.totalorder %s104, %s118
      %p120 = scmp.eq.s32.totalorder %s21, 0
      %p121 = por %p119, %p120
      %s123 = sadd.s32 %s122, 1
      %p126 = scmp.eq.s32.totalorder %s15, 1
      %p127 = scmp.ne.s32.totalorder %s122, %s124
      %p128 = scmp.eq.s32.totalorder %s15, 0
      %p129 = por %p127, %p128
      %p130 = scmp.ne.s32.totalorder %s122, %s124
      %p131 = scmp.eq.s32.totalorder %s20, 1
      %p132 = por %p130, %p131
      %p133 = scmp.ne.s32.totalorder %s124, %s125
      %p134 = scmp.eq.s32.totalorder %s20, 0
      %p135 = por %p133, %p134
      %p136 = scmp.ne.s32.totalorder %s124, %s125
      %p137 = scmp.eq.s32.totalorder %s21, 1
      %p138 = por %p136, %p137
      %p140 = scmp.ne.s32.totalorder %s125, %s139
      %p141 = scmp.eq.s32.totalorder %s21, 0
      %p142 = por %p140, %p141
      %s143 = ssub.s32 %s15, %s22
      %p144 = scmp.eq.s32.totalorder %s143, 0
      %s146 = sadd.s32 %s145, 1
      %s147 = scalar_select %p144, %s145, %s146
      %p150 = pneg %p144
      %p151 = scmp.eq.s32.totalorder %s15, 1
      %p152 = por %p150, %p151
      %p153 = scmp.ne.s32.totalorder %s145, %s148
      %p154 = scmp.eq.s32.totalorder %s15, 0
      %p155 = por %p153, %p154
      %p156 = scmp.ne.s32.totalorder %s145, %s148
      %p157 = scmp.eq.s32.totalorder %s20, 1
      %p158 = por %p156, %p157
      %p159 = scmp.ne.s32.totalorder %s148, %s149
      %p160 = scmp.eq.s32.totalorder %s20, 0
      %p161 = por %p159, %p160
      %p162 = scmp.ne.s32.totalorder %s148, %s149
      %p163 = scmp.eq.s32.totalorder %s21, 1
      %p164 = por %p162, %p163
      %p166 = scmp.ne.s32.totalorder %s149, %s165
      %p167 = scmp.eq.s32.totalorder %s21, 0
      %p168 = por %p166, %p167
      %p169 = scmp.le.s32.totalorder 1, %s15
      %p170 = scmp.lt.s32.totalorder %s15, 3
      %p171 = pnand %p169, %p170
      %p172 = pneg %p171
      // Predicated region
      $region9: #{tpu_custom_call.1} parent=5 // pred_check
        _
      $region10: #{tpu_custom_call.1} parent=5 // pred_check_branch
        %174 = sbr.rel (%p171) target = $region12
      $region11: #{tpu_custom_call.1} parent=5 // pred_region
        %s175 = ssub.s32 %s15, 1
        // Predicated region
        $region13: #{tpu_custom_call.1} parent=11 // pred_check
          %p176 = pneg %p114
        $region14: #{tpu_custom_call.1} parent=11 // pred_check_branch
          %178 = sbr.rel (%p176) target = $region16
        $region15: #{tpu_custom_call.1} parent=11 // pred_region
          _
        $region16: #{tpu_custom_call.1} parent=11 // pred_fallthru
          _
        // Predicated region
        $region17: #{tpu_custom_call.1} parent=11 // pred_check
          %p179 = pneg %p135
        $region18: #{tpu_custom_call.1} parent=11 // pred_check_branch
          %181 = sbr.rel (%p179) target = $region20
        $region19: #{tpu_custom_call.1} parent=11 // pred_region
          _
        $region20: #{tpu_custom_call.1} parent=11 // pred_fallthru
          _
      $region12: #{tpu_custom_call.1} parent=5 // pred_fallthru
        _
      %p182 = scmp.lt.s32.totalorder %s15, 2
      // Predicated region
      $region21: #{tpu_custom_call.1} parent=5 // pred_check
        %p183 = pneg %p182
      $region22: #{tpu_custom_call.1} parent=5 // pred_check_branch
        %185 = sbr.rel (%p183) target = $region24
      $region23: #{tpu_custom_call.1} parent=5 // pred_region
        // Predicated region
        $region25: #{tpu_custom_call.1} parent=23 // pred_check
          %p186 = pneg %p35
        $region26: #{tpu_custom_call.1} parent=23 // pred_check_branch
          %188 = sbr.rel (%p186) target = $region28
        $region27: #{tpu_custom_call.1} parent=23 // pred_region
          %p189 = scmp.lt.s32.totalorder %s15, 1
          %s190 = scalar_select %p189, %s15, 1
          %s191 = smul.addr %s190, 4
          %s192 = scalar_lea.vmem %s0, %s191
        $region28: #{tpu_custom_call.1} parent=23 // pred_fallthru
          _
        // Predicated region
        $region29: #{tpu_custom_call.1} parent=23 // pred_check
          %p193 = pneg %p61
        $region30: #{tpu_custom_call.1} parent=23 // pred_check_branch
          %195 = sbr.rel (%p193) target = $region32
        $region31: #{tpu_custom_call.1} parent=23 // pred_region
          %p196 = scmp.lt.s32.totalorder %s15, 1
          %s197 = scalar_select %p196, %s15, 1
          %s198 = smul.addr %s197, 10
          %s199 = smul.addr %s198, 8
          %s200 = scalar_lea.vmem %s1, %s199
        $region32: #{tpu_custom_call.1} parent=23 // pred_fallthru
          _
        // Predicated region
        $region33: #{tpu_custom_call.1} parent=23 // pred_check
          %p201 = pneg %p87
        $region34: #{tpu_custom_call.1} parent=23 // pred_check_branch
          %203 = sbr.rel (%p201) target = $region36
        $region35: #{tpu_custom_call.1} parent=23 // pred_region
          %p204 = scmp.lt.s32.totalorder %s15, 1
          %s205 = scalar_select %p204, %s15, 1
          %s206 = smul.addr %s205, 2
          %s207 = scalar_lea.vmem %s2, %s206
        $region36: #{tpu_custom_call.1} parent=23 // pred_fallthru
          _
      $region24: #{tpu_custom_call.1} parent=5 // pred_fallthru
        _
      %p208 = scmp.le.s32.totalorder 1, %s15
      %p209 = scmp.lt.s32.totalorder %s15, 3
      %p210 = pnand %p208, %p209
      %p211 = pneg %p210
      // Predicated region
      $region37: #{tpu_custom_call.1} parent=5 // pred_check
        _
      $region38: #{tpu_custom_call.1} parent=5 // pred_check_branch
        %213 = sbr.rel (%p210) target = $region40
      $region39: #{tpu_custom_call.1} parent=5 // pred_region
        %s214 = ssub.s32 %s15, 1
        %p215 = scmp.lt.s32.totalorder %s20, 1
        %s216 = scalar_select %p215, %s20, 1
        %s217 = smul.addr %s216, 4
        %s218 = scalar_lea.vmem %s0, %s217
        %p219 = pneg %p41
        %p220 = pneg %p38
        %p221 = scmp.lt.s32.totalorder %s20, 1
        %s222 = scalar_select %p221, %s20, 1
        %s223 = smul.addr %s222, 10
        %s224 = smul.addr %s223, 8
        %s225 = scalar_lea.vmem %s1, %s224
        %p226 = pneg %p67
        %p227 = pneg %p64
        %p228 = scmp.lt.s32.totalorder %s20, 1
        %s229 = scalar_select %p228, %s20, 1
        %s230 = smul.addr %s229, 2
        %s231 = scalar_lea.vmem %s2, %s230
        %p232 = pneg %p93
        %p233 = pneg %p90
        %p234 = pneg %p114
        %p235 = pneg %p111
        %p236 = pneg %p135
        %p237 = pneg %p132
        %p238 = pneg %p161
        %p239 = pneg %p158
        %s240 = sand.u32 %s148, 1
        %s241 = scalar_lea.sflag [#allocation4], %s240
        %s242 = sand.u32 %s148, 1
        %s243 = smul.addr %s242, 8
        %s244 = scalar_lea.vmem [#allocation3], %s243
        %p245 = scmp.lt.s32.totalorder %s20, 1
        %s246 = scalar_select %p245, %s20, 1
        %s247 = smul.addr %s246, 4
        %s248 = scalar_lea.vmem %s0, %s247
        %p249 = scmp.lt.s32.totalorder %s20, 1
        %s250 = scalar_select %p249, %s20, 1
        %s251 = smul.addr %s250, 10
        %s252 = smul.addr %s251, 8
        %s253 = scalar_lea.vmem %s1, %s252
        %p254 = scmp.lt.s32.totalorder %s20, 1
        %s255 = scalar_select %p254, %s20, 1
        %s256 = smul.addr %s255, 2
        %s257 = scalar_lea.vmem %s2, %s256
        %v258 = vld [vmem:[%s248] sm:$0xf]
        %v259 = vld [vmem:[%s253] sm:$0xff]
        %v260 = vld [vmem:[%s253 + $0x8] sm:$0xff]
        %v261 = vld [vmem:[%s253 + $0x10] sm:$0xff]
        %v262 = vld [vmem:[%s253 + $0x18] sm:$0xff]
        %v263 = vld [vmem:[%s253 + $0x20] sm:$0xff]
        %v264 = vld [vmem:[%s253 + $0x28] sm:$0xff]
        %v265 = vld [vmem:[%s253 + $0x30] sm:$0xff]
        %v266 = vld [vmem:[%s253 + $0x38] sm:$0xff]
        %v267 = vld [vmem:[%s253 + $0x40] sm:$0xf]
        %v268 = vld [vmem:[%s253 + $0x48] sm:$0xf]
        %s269 = sld [smem:[#allocation2]]
        %v270 = vld [vmem:[%s257] sm:$0x3]
        %v271 = vstv %s269
        %v272 = vmul.f32 %v271, %v270
        %v274 = vlaneseq
        %v275 = vshrl.u32 %v274, 7
        %v276 = vsub.s32 0, %v275
        %v277 = vrot.slane %v272, %v276
        %v278 = vlaneseq
        %v279 = vshrl.u32 %v278, 7
        %v280 = vsub.s32 1, %v279
        %v281 = vrot.slane %v272, %v280
        %vm284 = vcmask 293888
        %v286 = vsel %vm284, %v258, 0
        %vm288 = vcmask 1043456
        %v290 = vsel %vm288, %v267, 0
        %v293 = vsel %vm288, %v268, 0
        %v295 = vand.u32 %v260, 4294901760
        %296 = vmatprep.subr.mxu0 %v295
        %v297 = vand.u32 %v259, 4294901760
        %298 = vmatpush1.msra.mxu0 %v297
        %v299 = vand.u32 %v262, 4294901760
        %300 = vmatprep.subr.mxu0 %v299
        %v301 = vand.u32 %v261, 4294901760
        %302 = vmatpush1.msra.mxu0 %v301
        %v303 = vand.u32 %v264, 4294901760
        %304 = vmatprep.subr.mxu0 %v303
        %v305 = vand.u32 %v263, 4294901760
        %306 = vmatpush1.msra.mxu0 %v305
        %v307 = vand.u32 %v266, 4294901760
        %308 = vmatprep.subr.mxu0 %v307
        %v309 = vand.u32 %v265, 4294901760
        %310 = vmatpush1.msra.mxu0 %v309
        %v311 = vand.u32 %v293, 4294901760
        %312 = vmatprep.subr.mxu0 %v311
        %v313 = vand.u32 %v290, 4294901760
        %314 = vmatpush1.msra.mxu0 %v313
        %315 = vmatprep.subr.mxu0 0.0
        %316 = vmatpush1.msra.mxu0 0.0
        %317 = vmatprep.subr.mxu0 0.0
        %318 = vmatpush1.msra.mxu0 0.0
        %319 = vmatprep.subr.mxu0 0.0
        %320 = vmatpush1.msra.mxu0 0.0
        %321 = vmatprep.subr.mxu0 0.0
        %322 = vmatpush1.msra.mxu0 0.0
        %323 = vmatprep.subr.mxu0 0.0
        %324 = vmatpush1.msra.mxu0 0.0
        %325 = vmatprep.subr.mxu0 0.0
        %326 = vmatpush1.msra.mxu0 0.0
        %327 = vmatprep.subr.mxu0 0.0
        %328 = vmatpush1.msra.mxu0 0.0
        %329 = vmatprep.subr.mxu0 0.0
        %330 = vmatpush1.msra.mxu0 0.0
        %331 = vmatprep.subr.mxu0 0.0
        %332 = vmatpush1.msra.mxu0 0.0
        %333 = vmatprep.subr.mxu0 0.0
        %334 = vmatpush1.msra.mxu0 0.0
        %335 = vmatprep.subr.mxu0 0.0
        %336 = vmatpush1.msra.mxu0 0.0
        %337 = vmatprep.subr.mxu0 0.0
        %338 = vmatpush1.msra.mxu0 0.0
        %339 = vmatprep.subr.mxu0 0.0
        %340 = vmatpush1.msra.mxu0 0.0
        %341 = vmatprep.subr.mxu0 0.0
        %342 = vmatpush1.msra.mxu0 0.0
        %343 = vmatprep.subr.mxu0 0.0
        %344 = vmatpush1.msra.mxu0 0.0
        %345 = vmatprep.subr.mxu0 0.0
        %346 = vmatpush1.msra.mxu0 0.0
        %347 = vmatprep.subr.mxu0 0.0
        %348 = vmatpush1.msra.mxu0 0.0
        %349 = vmatprep.subr.mxu0 0.0
        %350 = vmatpush1.msra.mxu0 0.0
        %351 = vmatprep.subr.mxu0 0.0
        %352 = vmatpush1.msra.mxu0 0.0
        %353 = vmatprep.subr.mxu0 0.0
        %354 = vmatpush1.msra.mxu0 0.0
        %355 = vmatprep.subr.mxu0 0.0
        %356 = vmatpush1.msra.mxu0 0.0
        %357 = vmatprep.subr.mxu0 0.0
        %358 = vmatpush1.msra.mxu0 0.0
        %359 = vmatprep.subr.mxu0 0.0
        %360 = vmatpush1.msra.mxu0 0.0
        %361 = vmatprep.subr.mxu0 0.0
        %362 = vmatpush1.msra.mxu0 0.0
        %363 = vmatprep.subr.mxu0 0.0
        %364 = vmatpush1.msra.mxu0 0.0
        %365 = vmatprep.subr.mxu0 0.0
        %366 = vmatpush1.msra.mxu0 0.0
        %367 = vmatprep.subr.mxu0 0.0
        %368 = vmatpush1.msra.mxu0 0.0
        %369 = vmatprep.mubr.f32.mxu0 0.0
        %v370 = vand.u32 %v286, 4294901760
        %v371 = vsub.f32 %v286, %v370
        %v372 = vand.u32 %v371, 4294901760
        %v373 = vsub.f32 %v371, %v372
        %v374 = vand.u32 %v373, 4294901760
        %375 = vmatmul.mubr.f32.gmra.mrb[0].mxu0 %v374
        %v376 = vpop.f32.mrb[0].mxu0
        %v377 = vadd.f32 %v277, %v376
        %v378 = vpop.f32.mrb[0].mxu0
        %v379 = vadd.f32 %v281, %v378
        %380 = vdwg.mxu0
        %v381 = vand.u32 %v260, 4294901760
        %v382 = vsub.f32 %v260, %v381
        %v383 = vand.u32 %v382, 4294901760
        %v384 = vsub.f32 %v382, %v383
        %v385 = vand.u32 %v384, 4294901760
        %386 = vmatprep.subr.mxu0 %v385
        %v387 = vand.u32 %v259, 4294901760
        %v388 = vsub.f32 %v259, %v387
        %v389 = vand.u32 %v388, 4294901760
        %v390 = vsub.f32 %v388, %v389
        %v391 = vand.u32 %v390, 4294901760
        %392 = vmatpush1.msra.mxu0 %v391
        %v393 = vand.u32 %v262, 4294901760
        %v394 = vsub.f32 %v262, %v393
        %v395 = vand.u32 %v394, 4294901760
        %v396 = vsub.f32 %v394, %v395
        %v397 = vand.u32 %v396, 4294901760
        %398 = vmatprep.subr.mxu0 %v397
        %v399 = vand.u32 %v261, 4294901760
        %v400 = vsub.f32 %v261, %v399
        %v401 = vand.u32 %v400, 4294901760
        %v402 = vsub.f32 %v400, %v401
        %v403 = vand.u32 %v402, 4294901760
        %404 = vmatpush1.msra.mxu0 %v403
        %v405 = vand.u32 %v264, 4294901760
        %v406 = vsub.f32 %v264, %v405
        %v407 = vand.u32 %v406, 4294901760
        %v408 = vsub.f32 %v406, %v407
        %v409 = vand.u32 %v408, 4294901760
        %410 = vmatprep.subr.mxu0 %v409
        %v411 = vand.u32 %v263, 4294901760
        %v412 = vsub.f32 %v263, %v411
        %v413 = vand.u32 %v412, 4294901760
        %v414 = vsub.f32 %v412, %v413
        %v415 = vand.u32 %v414, 4294901760
        %416 = vmatpush1.msra.mxu0 %v415
        %v417 = vand.u32 %v266, 4294901760
        %v418 = vsub.f32 %v266, %v417
        %v419 = vand.u32 %v418, 4294901760
        %v420 = vsub.f32 %v418, %v419
        %v421 = vand.u32 %v420, 4294901760
        %422 = vmatprep.subr.mxu0 %v421
        %v423 = vand.u32 %v265, 4294901760
        %v424 = vsub.f32 %v265, %v423
        %v425 = vand.u32 %v424, 4294901760
        %v426 = vsub.f32 %v424, %v425
        %v427 = vand.u32 %v426, 4294901760
        %428 = vmatpush1.msra.mxu0 %v427
        %v429 = vand.u32 %v293, 4294901760
        %v430 = vsub.f32 %v293, %v429
        %v431 = vand.u32 %v430, 4294901760
        %v432 = vsub.f32 %v430, %v431
        %v433 = vand.u32 %v432, 4294901760
        %434 = vmatprep.subr.mxu0 %v433
        %v435 = vand.u32 %v290, 4294901760
        %v436 = vsub.f32 %v290, %v435
        %v437 = vand.u32 %v436, 4294901760
        %v438 = vsub.f32 %v436, %v437
        %v439 = vand.u32 %v438, 4294901760
        %440 = vmatpush1.msra.mxu0 %v439
        %441 = vmatprep.subr.mxu0 0.0
        %442 = vmatpush1.msra.mxu0 0.0
        %443 = vmatprep.subr.mxu0 0.0
        %444 = vmatpush1.msra.mxu0 0.0
        %445 = vmatprep.subr.mxu0 0.0
        %446 = vmatpush1.msra.mxu0 0.0
        %447 = vmatprep.subr.mxu0 0.0
        %448 = vmatpush1.msra.mxu0 0.0
        %449 = vmatprep.subr.mxu0 0.0
        %450 = vmatpush1.msra.mxu0 0.0
        %451 = vmatprep.subr.mxu0 0.0
        %452 = vmatpush1.msra.mxu0 0.0
        %453 = vmatprep.subr.mxu0 0.0
        %454 = vmatpush1.msra.mxu0 0.0
        %455 = vmatprep.subr.mxu0 0.0
        %456 = vmatpush1.msra.mxu0 0.0
        %457 = vmatprep.subr.mxu0 0.0
        %458 = vmatpush1.msra.mxu0 0.0
        %459 = vmatprep.subr.mxu0 0.0
        %460 = vmatpush1.msra.mxu0 0.0
        %461 = vmatprep.subr.mxu0 0.0
        %462 = vmatpush1.msra.mxu0 0.0
        %463 = vmatprep.subr.mxu0 0.0
        %464 = vmatpush1.msra.mxu0 0.0
        %465 = vmatprep.subr.mxu0 0.0
        %466 = vmatpush1.msra.mxu0 0.0
        %467 = vmatprep.subr.mxu0 0.0
        %468 = vmatpush1.msra.mxu0 0.0
        %469 = vmatprep.subr.mxu0 0.0
        %470 = vmatpush1.msra.mxu0 0.0
        %471 = vmatprep.subr.mxu0 0.0
        %472 = vmatpush1.msra.mxu0 0.0
        %473 = vmatprep.subr.mxu0 0.0
        %474 = vmatpush1.msra.mxu0 0.0
        %475 = vmatprep.subr.mxu0 0.0
        %476 = vmatpush1.msra.mxu0 0.0
        %477 = vmatprep.subr.mxu0 0.0
        %478 = vmatpush1.msra.mxu0 0.0
        %479 = vmatprep.subr.mxu0 0.0
        %480 = vmatpush1.msra.mxu0 0.0
        %481 = vmatprep.subr.mxu0 0.0
        %482 = vmatpush1.msra.mxu0 0.0
        %483 = vmatprep.subr.mxu0 0.0
        %484 = vmatpush1.msra.mxu0 0.0
        %485 = vmatprep.subr.mxu0 0.0
        %486 = vmatpush1.msra.mxu0 0.0
        %487 = vmatprep.subr.mxu0 0.0
        %488 = vmatpush1.msra.mxu0 0.0
        %489 = vmatprep.subr.mxu0 0.0
        %490 = vmatpush1.msra.mxu0 0.0
        %491 = vmatprep.subr.mxu0 0.0
        %492 = vmatpush1.msra.mxu0 0.0
        %493 = vmatprep.subr.mxu0 0.0
        %494 = vmatpush1.msra.mxu0 0.0
        %495 = vmatprep.mubr.f32.mxu0 0.0
        %v496 = vand.u32 %v286, 4294901760
        %497 = vmatmul.mubr.f32.gmra.mrb[0].mxu0 %v496
        %v498 = vpop.f32.mrb[0].mxu0
        %v499 = vadd.f32 %v377, %v498
        %v500 = vpop.f32.mrb[0].mxu0
        %v501 = vadd.f32 %v379, %v500
        %502 = vdwg.mxu0
        %v503 = vand.u32 %v260, 4294901760
        %v504 = vsub.f32 %v260, %v503
        %505 = vmatprep.subr.mxu0 %v504
        %v506 = vand.u32 %v259, 4294901760
        %v507 = vsub.f32 %v259, %v506
        %508 = vmatpush1.msra.mxu0 %v507
        %v509 = vand.u32 %v262, 4294901760
        %v510 = vsub.f32 %v262, %v509
        %511 = vmatprep.subr.mxu0 %v510
        %v512 = vand.u32 %v261, 4294901760
        %v513 = vsub.f32 %v261, %v512
        %514 = vmatpush1.msra.mxu0 %v513
        %v515 = vand.u32 %v264, 4294901760
        %v516 = vsub.f32 %v264, %v515
        %517 = vmatprep.subr.mxu0 %v516
        %v518 = vand.u32 %v263, 4294901760
        %v519 = vsub.f32 %v263, %v518
        %520 = vmatpush1.msra.mxu0 %v519
        %v521 = vand.u32 %v266, 4294901760
        %v522 = vsub.f32 %v266, %v521
        %523 = vmatprep.subr.mxu0 %v522
        %v524 = vand.u32 %v265, 4294901760
        %v525 = vsub.f32 %v265, %v524
        %526 = vmatpush1.msra.mxu0 %v525
        %v527 = vand.u32 %v293, 4294901760
        %v528 = vsub.f32 %v293, %v527
        %529 = vmatprep.subr.mxu0 %v528
        %v530 = vand.u32 %v290, 4294901760
        %v531 = vsub.f32 %v290, %v530
        %532 = vmatpush1.msra.mxu0 %v531
        %533 = vmatprep.subr.mxu0 0.0
        %534 = vmatpush1.msra.mxu0 0.0
        %535 = vmatprep.subr.mxu0 0.0
        %536 = vmatpush1.msra.mxu0 0.0
        %537 = vmatprep.subr.mxu0 0.0
        %538 = vmatpush1.msra.mxu0 0.0
        %539 = vmatprep.subr.mxu0 0.0
        %540 = vmatpush1.msra.mxu0 0.0
        %541 = vmatprep.subr.mxu0 0.0
        %542 = vmatpush1.msra.mxu0 0.0
        %543 = vmatprep.subr.mxu0 0.0
        %544 = vmatpush1.msra.mxu0 0.0
        %545 = vmatprep.subr.mxu0 0.0
        %546 = vmatpush1.msra.mxu0 0.0
        %547 = vmatprep.subr.mxu0 0.0
        %548 = vmatpush1.msra.mxu0 0.0
        %549 = vmatprep.subr.mxu0 0.0
        %550 = vmatpush1.msra.mxu0 0.0
        %551 = vmatprep.subr.mxu0 0.0
        %552 = vmatpush1.msra.mxu0 0.0
        %553 = vmatprep.subr.mxu0 0.0
        %554 = vmatpush1.msra.mxu0 0.0
        %555 = vmatprep.subr.mxu0 0.0
        %556 = vmatpush1.msra.mxu0 0.0
        %557 = vmatprep.subr.mxu0 0.0
        %558 = vmatpush1.msra.mxu0 0.0
        %559 = vmatprep.subr.mxu0 0.0
        %560 = vmatpush1.msra.mxu0 0.0
        %561 = vmatprep.subr.mxu0 0.0
        %562 = vmatpush1.msra.mxu0 0.0
        %563 = vmatprep.subr.mxu0 0.0
        %564 = vmatpush1.msra.mxu0 0.0
        %565 = vmatprep.subr.mxu0 0.0
        %566 = vmatpush1.msra.mxu0 0.0
        %567 = vmatprep.subr.mxu0 0.0
        %568 = vmatpush1.msra.mxu0 0.0
        %569 = vmatprep.subr.mxu0 0.0
        %570 = vmatpush1.msra.mxu0 0.0
        %571 = vmatprep.subr.mxu0 0.0
        %572 = vmatpush1.msra.mxu0 0.0
        %573 = vmatprep.subr.mxu0 0.0
        %574 = vmatpush1.msra.mxu0 0.0
        %575 = vmatprep.subr.mxu0 0.0
        %576 = vmatpush1.msra.mxu0 0.0
        %577 = vmatprep.subr.mxu0 0.0
        %578 = vmatpush1.msra.mxu0 0.0
        %579 = vmatprep.subr.mxu0 0.0
        %580 = vmatpush1.msra.mxu0 0.0
        %581 = vmatprep.subr.mxu0 0.0
        %582 = vmatpush1.msra.mxu0 0.0
        %583 = vmatprep.subr.mxu0 0.0
        %584 = vmatpush1.msra.mxu0 0.0
        %585 = vmatprep.subr.mxu0 0.0
        %586 = vmatpush1.msra.mxu0 0.0
        %587 = vmatprep.mubr.f32.mxu0 0.0
        %v588 = vand.u32 %v286, 4294901760
        %v589 = vsub.f32 %v286, %v588
        %590 = vmatmul.mubr.f32.gmra.mrb[0].mxu0 %v589
        %v591 = vpop.f32.mrb[0].mxu0
        %v592 = vadd.f32 %v499, %v591
        %v593 = vpop.f32.mrb[0].mxu0
        %v594 = vadd.f32 %v501, %v593
        %595 = vdwg.mxu0
        %v596 = vand.u32 %v260, 4294901760
        %597 = vmatprep.subr.mxu0 %v596
        %v598 = vand.u32 %v259, 4294901760
        %599 = vmatpush1.msra.mxu0 %v598
        %v600 = vand.u32 %v262, 4294901760
        %601 = vmatprep.subr.mxu0 %v600
        %v602 = vand.u32 %v261, 4294901760
        %603 = vmatpush1.msra.mxu0 %v602
        %v604 = vand.u32 %v264, 4294901760
        %605 = vmatprep.subr.mxu0 %v604
        %v606 = vand.u32 %v263, 4294901760
        %607 = vmatpush1.msra.mxu0 %v606
        %v608 = vand.u32 %v266, 4294901760
        %609 = vmatprep.subr.mxu0 %v608
        %v610 = vand.u32 %v265, 4294901760
        %611 = vmatpush1.msra.mxu0 %v610
        %v612 = vand.u32 %v293, 4294901760
        %613 = vmatprep.subr.mxu0 %v612
        %v614 = vand.u32 %v290, 4294901760
        %615 = vmatpush1.msra.mxu0 %v614
        %616 = vmatprep.subr.mxu0 0.0
        %617 = vmatpush1.msra.mxu0 0.0
        %618 = vmatprep.subr.mxu0 0.0
        %619 = vmatpush1.msra.mxu0 0.0
        %620 = vmatprep.subr.mxu0 0.0
        %621 = vmatpush1.msra.mxu0 0.0
        %622 = vmatprep.subr.mxu0 0.0
        %623 = vmatpush1.msra.mxu0 0.0
        %624 = vmatprep.subr.mxu0 0.0
        %625 = vmatpush1.msra.mxu0 0.0
        %626 = vmatprep.subr.mxu0 0.0
        %627 = vmatpush1.msra.mxu0 0.0
        %628 = vmatprep.subr.mxu0 0.0
        %629 = vmatpush1.msra.mxu0 0.0
        %630 = vmatprep.subr.mxu0 0.0
        %631 = vmatpush1.msra.mxu0 0.0
        %632 = vmatprep.subr.mxu0 0.0
        %633 = vmatpush1.msra.mxu0 0.0
        %634 = vmatprep.subr.mxu0 0.0
        %635 = vmatpush1.msra.mxu0 0.0
        %636 = vmatprep.subr.mxu0 0.0
        %637 = vmatpush1.msra.mxu0 0.0
        %638 = vmatprep.subr.mxu0 0.0
        %639 = vmatpush1.msra.mxu0 0.0
        %640 = vmatprep.subr.mxu0 0.0
        %641 = vmatpush1.msra.mxu0 0.0
        %642 = vmatprep.subr.mxu0 0.0
        %643 = vmatpush1.msra.mxu0 0.0
        %644 = vmatprep.subr.mxu0 0.0
        %645 = vmatpush1.msra.mxu0 0.0
        %646 = vmatprep.subr.mxu0 0.0
        %647 = vmatpush1.msra.mxu0 0.0
        %648 = vmatprep.subr.mxu0 0.0
        %649 = vmatpush1.msra.mxu0 0.0
        %650 = vmatprep.subr.mxu0 0.0
        %651 = vmatpush1.msra.mxu0 0.0
        %652 = vmatprep.subr.mxu0 0.0
        %653 = vmatpush1.msra.mxu0 0.0
        %654 = vmatprep.subr.mxu0 0.0
        %655 = vmatpush1.msra.mxu0 0.0
        %656 = vmatprep.subr.mxu0 0.0
        %657 = vmatpush1.msra.mxu0 0.0
        %658 = vmatprep.subr.mxu0 0.0
        %659 = vmatpush1.msra.mxu0 0.0
        %660 = vmatprep.subr.mxu0 0.0
        %661 = vmatpush1.msra.mxu0 0.0
        %662 = vmatprep.subr.mxu0 0.0
        %663 = vmatpush1.msra.mxu0 0.0
        %664 = vmatprep.subr.mxu0 0.0
        %665 = vmatpush1.msra.mxu0 0.0
        %666 = vmatprep.subr.mxu0 0.0
        %667 = vmatpush1.msra.mxu0 0.0
        %668 = vmatprep.subr.mxu0 0.0
        %669 = vmatpush1.msra.mxu0 0.0
        %670 = vmatprep.mubr.f32.mxu0 0.0
        %v671 = vand.u32 %v286, 4294901760
        %v672 = vsub.f32 %v286, %v671
        %v673 = vand.u32 %v672, 4294901760
        %674 = vmatmul.mubr.f32.gmra.mrb[0].mxu0 %v673
        %v675 = vpop.f32.mrb[0].mxu0
        %v676 = vadd.f32 %v592, %v675
        %v677 = vpop.f32.mrb[0].mxu0
        %v678 = vadd.f32 %v594, %v677
        %679 = vdwg.mxu0
        %v680 = vand.u32 %v260, 4294901760
        %v681 = vsub.f32 %v260, %v680
        %v682 = vand.u32 %v681, 4294901760
        %683 = vmatprep.subr.mxu0 %v682
        %v684 = vand.u32 %v259, 4294901760
        %v685 = vsub.f32 %v259, %v684
        %v686 = vand.u32 %v685, 4294901760
        %687 = vmatpush1.msra.mxu0 %v686
        %v688 = vand.u32 %v262, 4294901760
        %v689 = vsub.f32 %v262, %v688
        %v690 = vand.u32 %v689, 4294901760
        %691 = vmatprep.subr.mxu0 %v690
        %v692 = vand.u32 %v261, 4294901760
        %v693 = vsub.f32 %v261, %v692
        %v694 = vand.u32 %v693, 4294901760
        %695 = vmatpush1.msra.mxu0 %v694
        %v696 = vand.u32 %v264, 4294901760
        %v697 = vsub.f32 %v264, %v696
        %v698 = vand.u32 %v697, 4294901760
        %699 = vmatprep.subr.mxu0 %v698
        %v700 = vand.u32 %v263, 4294901760
        %v701 = vsub.f32 %v263, %v700
        %v702 = vand.u32 %v701, 4294901760
        %703 = vmatpush1.msra.mxu0 %v702
        %v704 = vand.u32 %v266, 4294901760
        %v705 = vsub.f32 %v266, %v704
        %v706 = vand.u32 %v705, 4294901760
        %707 = vmatprep.subr.mxu0 %v706
        %v708 = vand.u32 %v265, 4294901760
        %v709 = vsub.f32 %v265, %v708
        %v710 = vand.u32 %v709, 4294901760
        %711 = vmatpush1.msra.mxu0 %v710
        %v712 = vand.u32 %v293, 4294901760
        %v713 = vsub.f32 %v293, %v712
        %v714 = vand.u32 %v713, 4294901760
        %715 = vmatprep.subr.mxu0 %v714
        %v716 = vand.u32 %v290, 4294901760
        %v717 = vsub.f32 %v290, %v716
        %v718 = vand.u32 %v717, 4294901760
        %719 = vmatpush1.msra.mxu0 %v718
        %720 = vmatprep.subr.mxu0 0.0
        %721 = vmatpush1.msra.mxu0 0.0
        %722 = vmatprep.subr.mxu0 0.0
        %723 = vmatpush1.msra.mxu0 0.0
        %724 = vmatprep.subr.mxu0 0.0
        %725 = vmatpush1.msra.mxu0 0.0
        %726 = vmatprep.subr.mxu0 0.0
        %727 = vmatpush1.msra.mxu0 0.0
        %728 = vmatprep.subr.mxu0 0.0
        %729 = vmatpush1.msra.mxu0 0.0
        %730 = vmatprep.subr.mxu0 0.0
        %731 = vmatpush1.msra.mxu0 0.0
        %732 = vmatprep.subr.mxu0 0.0
        %733 = vmatpush1.msra.mxu0 0.0
        %734 = vmatprep.subr.mxu0 0.0
        %735 = vmatpush1.msra.mxu0 0.0
        %736 = vmatprep.subr.mxu0 0.0
        %737 = vmatpush1.msra.mxu0 0.0
        %738 = vmatprep.subr.mxu0 0.0
        %739 = vmatpush1.msra.mxu0 0.0
        %740 = vmatprep.subr.mxu0 0.0
        %741 = vmatpush1.msra.mxu0 0.0
        %742 = vmatprep.subr.mxu0 0.0
        %743 = vmatpush1.msra.mxu0 0.0
        %744 = vmatprep.subr.mxu0 0.0
        %745 = vmatpush1.msra.mxu0 0.0
        %746 = vmatprep.subr.mxu0 0.0
        %747 = vmatpush1.msra.mxu0 0.0
        %748 = vmatprep.subr.mxu0 0.0
        %749 = vmatpush1.msra.mxu0 0.0
        %750 = vmatprep.subr.mxu0 0.0
        %751 = vmatpush1.msra.mxu0 0.0
        %752 = vmatprep.subr.mxu0 0.0
        %753 = vmatpush1.msra.mxu0 0.0
        %754 = vmatprep.subr.mxu0 0.0
        %755 = vmatpush1.msra.mxu0 0.0
        %756 = vmatprep.subr.mxu0 0.0
        %757 = vmatpush1.msra.mxu0 0.0
        %758 = vmatprep.subr.mxu0 0.0
        %759 = vmatpush1.msra.mxu0 0.0
        %760 = vmatprep.subr.mxu0 0.0
        %761 = vmatpush1.msra.mxu0 0.0
        %762 = vmatprep.subr.mxu0 0.0
        %763 = vmatpush1.msra.mxu0 0.0
        %764 = vmatprep.subr.mxu0 0.0
        %765 = vmatpush1.msra.mxu0 0.0
        %766 = vmatprep.subr.mxu0 0.0
        %767 = vmatpush1.msra.mxu0 0.0
        %768 = vmatprep.subr.mxu0 0.0
        %769 = vmatpush1.msra.mxu0 0.0
        %770 = vmatprep.subr.mxu0 0.0
        %771 = vmatpush1.msra.mxu0 0.0
        %772 = vmatprep.subr.mxu0 0.0
        %773 = vmatpush1.msra.mxu0 0.0
        %774 = vmatprep.mubr.f32.mxu0 0.0
        %v775 = vand.u32 %v286, 4294901760
        %776 = vmatmul.mubr.f32.gmra.mrb[0].mxu0 %v775
        %v777 = vpop.f32.mrb[0].mxu0
        %v778 = vadd.f32 %v676, %v777
        %v779 = vpop.f32.mrb[0].mxu0
        %v780 = vadd.f32 %v678, %v779
        %781 = vdwg.mxu0
        %v782 = vand.u32 %v260, 4294901760
        %783 = vmatprep.subr.mxu0 %v782
        %v784 = vand.u32 %v259, 4294901760
        %785 = vmatpush1.msra.mxu0 %v784
        %v786 = vand.u32 %v262, 4294901760
        %787 = vmatprep.subr.mxu0 %v786
        %v788 = vand.u32 %v261, 4294901760
        %789 = vmatpush1.msra.mxu0 %v788
        %v790 = vand.u32 %v264, 4294901760
        %791 = vmatprep.subr.mxu0 %v790
        %v792 = vand.u32 %v263, 4294901760
        %793 = vmatpush1.msra.mxu0 %v792
        %v794 = vand.u32 %v266, 4294901760
        %795 = vmatprep.subr.mxu0 %v794
        %v796 = vand.u32 %v265, 4294901760
        %797 = vmatpush1.msra.mxu0 %v796
        %v798 = vand.u32 %v293, 4294901760
        %799 = vmatprep.subr.mxu0 %v798
        %v800 = vand.u32 %v290, 4294901760
        %801 = vmatpush1.msra.mxu0 %v800
        %802 = vmatprep.subr.mxu0 0.0
        %803 = vmatpush1.msra.mxu0 0.0
        %804 = vmatprep.subr.mxu0 0.0
        %805 = vmatpush1.msra.mxu0 0.0
        %806 = vmatprep.subr.mxu0 0.0
        %807 = vmatpush1.msra.mxu0 0.0
        %808 = vmatprep.subr.mxu0 0.0
        %809 = vmatpush1.msra.mxu0 0.0
        %810 = vmatprep.subr.mxu0 0.0
        %811 = vmatpush1.msra.mxu0 0.0
        %812 = vmatprep.subr.mxu0 0.0
        %813 = vmatpush1.msra.mxu0 0.0
        %814 = vmatprep.subr.mxu0 0.0
        %815 = vmatpush1.msra.mxu0 0.0
        %816 = vmatprep.subr.mxu0 0.0
        %817 = vmatpush1.msra.mxu0 0.0
        %818 = vmatprep.subr.mxu0 0.0
        %819 = vmatpush1.msra.mxu0 0.0
        %820 = vmatprep.subr.mxu0 0.0
        %821 = vmatpush1.msra.mxu0 0.0
        %822 = vmatprep.subr.mxu0 0.0
        %823 = vmatpush1.msra.mxu0 0.0
        %824 = vmatprep.subr.mxu0 0.0
        %825 = vmatpush1.msra.mxu0 0.0
        %826 = vmatprep.subr.mxu0 0.0
        %827 = vmatpush1.msra.mxu0 0.0
        %828 = vmatprep.subr.mxu0 0.0
        %829 = vmatpush1.msra.mxu0 0.0
        %830 = vmatprep.subr.mxu0 0.0
        %831 = vmatpush1.msra.mxu0 0.0
        %832 = vmatprep.subr.mxu0 0.0
        %833 = vmatpush1.msra.mxu0 0.0
        %834 = vmatprep.subr.mxu0 0.0
        %835 = vmatpush1.msra.mxu0 0.0
        %836 = vmatprep.subr.mxu0 0.0
        %837 = vmatpush1.msra.mxu0 0.0
        %838 = vmatprep.subr.mxu0 0.0
        %839 = vmatpush1.msra.mxu0 0.0
        %840 = vmatprep.subr.mxu0 0.0
        %841 = vmatpush1.msra.mxu0 0.0
        %842 = vmatprep.subr.mxu0 0.0
        %843 = vmatpush1.msra.mxu0 0.0
        %844 = vmatprep.subr.mxu0 0.0
        %845 = vmatpush1.msra.mxu0 0.0
        %846 = vmatprep.subr.mxu0 0.0
        %847 = vmatpush1.msra.mxu0 0.0
        %848 = vmatprep.subr.mxu0 0.0
        %849 = vmatpush1.msra.mxu0 0.0
        %850 = vmatprep.subr.mxu0 0.0
        %851 = vmatpush1.msra.mxu0 0.0
        %852 = vmatprep.subr.mxu0 0.0
        %853 = vmatpush1.msra.mxu0 0.0
        %854 = vmatprep.subr.mxu0 0.0
        %855 = vmatpush1.msra.mxu0 0.0
        %856 = vmatprep.mubr.f32.mxu0 0.0
        %v857 = vand.u32 %v286, 4294901760
        %858 = vmatmul.mubr.f32.gmra.mrb[0].mxu0 %v857
        %v859 = vpop.f32.mrb[0].mxu0
        %v860 = vadd.f32 %v778, %v859
        %v861 = vpop.f32.mrb[0].mxu0
        %v862 = vadd.f32 %v780, %v861
        %863 = vdwg.mxu0
        %v864 = vld [vmem:[%s3] sm:$0xf]
        %866 = vset.pattern.permute.xlu0 0
        %867 = vperm.xlu0 %866, %v864
        %v868 = vpop.permute.xlu0 %867
        %v870 = vadd.f32 %v860, %v868
        %v871 = vadd.f32 %v862, %v868
        %v872 = vmul.f32 %v870, 0.2
        %v873 = vmul.f32 %v871, 0.2
        %v874 = vmax.f32 %v870, %v872
        %v875 = vmax.f32 %v871, %v873
        %v878 = vcombine.low %v874, %v875
        %880 = vst [vmem:[%s244] sm:$0xff] %v878
        %s881 = sand.u32 %s148, 1
        %s882 = scalar_lea.sflag [#allocation4], %s881
        %s883 = sand.u32 %s148, 1
        %s884 = smul.addr %s883, 8
        %s885 = scalar_lea.vmem [#allocation3], %s884
        // Predicated region
        $region41: #{tpu_custom_call.1} parent=39 // pred_check
          %p886 = pneg %p158
        $region42: #{tpu_custom_call.1} parent=39 // pred_check_branch
          %888 = sbr.rel (%p886) target = $region44
        $region43: #{tpu_custom_call.1} parent=39 // pred_region
          %s890 = ssub.s32 128, 128
          %891 = vsyncadd %s882, %s890
          %s892 = smul.addr %s20, 2
          %s893 = smul.addr %s892, 64
          %s894 = scalar_lea.hbm %s5, %s893
          %s896 = sshll.u32 %s885, 4
          %s897 = int_to_ptr.vmem [resolvable:$true] %s896
          %899 = dma.vmem_to_hbm [thread:$0]  %s897, 128, %s894, %s882
        $region44: #{tpu_custom_call.1} parent=39 // pred_fallthru
          _
      $region40: #{tpu_custom_call.1} parent=5 // pred_fallthru
        _
      %p900 = scmp.le.s32.totalorder 2, %s15
      // Predicated region
      $region45: #{tpu_custom_call.1} parent=5 // pred_check
        %p901 = pneg %p900
      $region46: #{tpu_custom_call.1} parent=5 // pred_check_branch
        %903 = sbr.rel (%p901) target = $region48
      $region47: #{tpu_custom_call.1} parent=5 // pred_region
        %s904 = ssub.s32 %s15, 2
        // Predicated region
        $region49: #{tpu_custom_call.1} parent=47 // pred_check
          %p905 = pneg %p164
        $region50: #{tpu_custom_call.1} parent=47 // pred_check_branch
          %907 = sbr.rel (%p905) target = $region52
        $region51: #{tpu_custom_call.1} parent=47 // pred_region
          %s908 = sand.u32 %s149, 1
          %s909 = scalar_lea.sflag [#allocation4], %s908
          %s910 = sand.u32 %s149, 1
          %s911 = smul.addr %s910, 8
          %s912 = scalar_lea.vmem [#allocation3], %s911
          %913 = dma.done %s909, 128
        $region52: #{tpu_custom_call.1} parent=47 // pred_fallthru
          _
      $region48: #{tpu_custom_call.1} parent=5 // pred_fallthru
        _
    $region6: #{tpu_custom_call.1} parent=1 // loop_footer
      %s19 = sadd.s32 1, %s15
    $region7: #{tpu_custom_call.1} parent=1 // loop_footer_branch
      %14 = sbr.rel target = $region3
    $region8: #{tpu_custom_call.1} parent=1 // loop_exit
      _
    %914 = vsyncpa [#allocation4], 1
    %s915 = scalar_lea.sflag [#allocation4], 1
    %916 = vsyncpa %s915, 1

</llo_original>
